<compile_context>
chip_gen: v6e
topology: v6e:2x2x1
jax: 0.10.0
libtpu: 0.0.40
codegen_flags: <defaults>
</compile_context>

<pallas_src>
import functools

import jax
import jax.numpy as jnp
import numpy as np
from jax import lax
from jax.experimental import pallas as pl
from jax.experimental.pallas import tpu as pltpu


def _round_up(x, m):
    return ((x + m - 1) // m) * m


def node_block_kernel(recv_ref, nodes_ref, edges_ref, wn_ref, we_ref, b_ref,
                      out_ref, acc_ref, *, agg_dtype):
    i = pl.program_id(0)          # node-tile index  ("parallel")
    k = pl.program_id(1)          # edge-tile index  ("arbitrary" reduction)
    tm = acc_ref.shape[0]
    tk = recv_ref.shape[1]

    # --- init accumulator at the start of each edge reduction ---
    @pl.when(k == 0)
    def _():
        acc_ref[...] = jnp.zeros_like(acc_ref)

    # --- tile-local one-hot mask; absolute node id = i*TM + local row id.
    #     Padded receiver lanes hold -1 and therefore never match. ---
    node_ids = lax.broadcasted_iota(jnp.int32, (tm, tk), 0) + i * tm
    mask = (node_ids == recv_ref[...]).astype(agg_dtype)            # (TM, TK)
    acc_ref[...] += jnp.dot(mask, edges_ref[...].astype(agg_dtype),
                            preferred_element_type=jnp.float32)     # (TM, edgedim_p) f32

    # --- finalize: fused concat + Linear, once per node tile ---
    @pl.when(k == pl.num_programs(1) - 1)
    def _():
        out = (jnp.dot(nodes_ref[...].astype(jnp.float32), wn_ref[...],
                       preferred_element_type=jnp.float32)
               + jnp.dot(acc_ref[...], we_ref[...],
                         preferred_element_type=jnp.float32)
               + b_ref[...])
        out_ref[...] = out.astype(out_ref.dtype)


def node_block_forward(nodes, edges, receivers, weight, bias, *,
                       tm=256, tk=512, agg_dtype=jnp.bfloat16,
                       vmem_limit_bytes=32 * 1024 * 1024):
    """nodes: (N_nodes, nodedim) f32; edges: (N_edges, edgedim) f32;
    receivers: (N_edges,) int32; weight: (nodedim, nodedim+edgedim); bias: (nodedim,)."""
    n_nodes, nodedim = nodes.shape
    n_edges, edgedim = edges.shape
    f32 = jnp.float32

    # Lane-dense padding of the feature dims (128-lane vregs, full MXU width).
    nodedim_p = _round_up(nodedim, 128)
    edgedim_p = _round_up(edgedim, 128)

    # Tile sizes: clamp defaults (sized for v7x 64 MiB VMEM) to the padded problem.
    tm = _round_up(min(tm, _round_up(n_nodes, 8)), 8)
    tk = _round_up(min(tk, _round_up(n_edges, 128)), 128)
    n_nodes_p = _round_up(n_nodes, tm)
    n_edges_p = _round_up(n_edges, tk)

    # Zero-pad operands; pad receivers with -1 so padded edge lanes never aggregate.
    nodes_p = jnp.zeros((n_nodes_p, nodedim_p), f32).at[:n_nodes, :nodedim].set(nodes.astype(f32))
    edges_p = jnp.zeros((n_edges_p, edgedim_p), f32).at[:n_edges, :edgedim].set(edges.astype(f32))
    recv_p = jnp.full((1, n_edges_p), -1, jnp.int32).at[0, :n_edges].set(receivers.astype(jnp.int32))

    # Split Linear weight (out = [nodes | agg] @ W.T + b), pre-transpose, zero-pad.
    wn_t = jnp.zeros((nodedim_p, nodedim_p), f32).at[:nodedim, :nodedim].set(
        jnp.transpose(weight[:, :nodedim]).astype(f32))
    we_t = jnp.zeros((edgedim_p, nodedim_p), f32).at[:edgedim, :nodedim].set(
        jnp.transpose(weight[:, nodedim:]).astype(f32))
    b_p = jnp.zeros((1, nodedim_p), f32).at[0, :nodedim].set(bias.astype(f32))

    grid = (n_nodes_p // tm, n_edges_p // tk)

    cost = pl.CostEstimate(
        flops=(2 * n_nodes_p * n_edges_p * edgedim_p
               + 2 * n_nodes_p * (nodedim_p + edgedim_p) * nodedim_p),
        transcendentals=0,
        bytes_accessed=(recv_p.size * 4 + nodes_p.size * 4 + edges_p.size * 4
                        + wn_t.size * 4 + we_t.size * 4 + b_p.size * 4
                        + n_nodes_p * nodedim_p * 4),
    )

    out_p = pl.pallas_call(
        functools.partial(node_block_kernel, agg_dtype=agg_dtype),
        out_shape=jax.ShapeDtypeStruct((n_nodes_p, nodedim_p), nodes.dtype),
        grid_spec=pltpu.PrefetchScalarGridSpec(
            num_scalar_prefetch=0,
            grid=grid,
            in_specs=[
                pl.BlockSpec((1, tk), lambda i, k: (0, k)),               # receivers (streamed)
                pl.BlockSpec((tm, nodedim_p), lambda i, k: (i, 0)),       # nodes (resident over k)
                pl.BlockSpec((tk, edgedim_p), lambda i, k: (k, 0)),       # edges (streamed)
                pl.BlockSpec((nodedim_p, nodedim_p), lambda i, k: (0, 0)),  # Wn^T (resident)
                pl.BlockSpec((edgedim_p, nodedim_p), lambda i, k: (0, 0)),  # We^T (resident)
                pl.BlockSpec((1, nodedim_p), lambda i, k: (0, 0)),          # bias (resident)
            ],
            out_specs=pl.BlockSpec((tm, nodedim_p), lambda i, k: (i, 0)),   # resident over k
            scratch_shapes=[pltpu.VMEM((tm, edgedim_p), jnp.float32)],      # agg accumulator
        ),
        compiler_params=pltpu.CompilerParams(
            dimension_semantics=("parallel", "arbitrary"),
            vmem_limit_bytes=vmem_limit_bytes,
        ),
        cost_estimate=cost,
    )(recv_p, nodes_p, edges_p, wn_t, we_t, b_p)

    return out_p[:n_nodes, :nodedim]


def node_block_reference(nodes, edges, receivers, weight, bias):
    n_nodes = nodes.shape[0]
    agg = jnp.zeros((n_nodes, edges.shape[1]), edges.dtype).at[receivers].add(edges)
    collected = jnp.concatenate([nodes, agg], axis=-1)
    return collected @ weight.T + bias


if __name__ == "__main__":
    key = jax.random.PRNGKey(0)
    k1, k2, k3, k4, k5 = jax.random.split(key, 5)

    # Small but multi-tile: exercises the (node-tile x edge-tile) grid,
    # the pl.when init/finalize, and the padded receiver tail.
    N_nodes, N_edges = 40, 300
    nodedim, edgedim = 32, 16

    nodes = jax.random.normal(k1, (N_nodes, nodedim), jnp.float32)
    edges = jax.random.normal(k2, (N_edges, edgedim), jnp.float32)
    receivers = jax.random.randint(k3, (N_edges,), 0, N_nodes, jnp.int32)

    # Deterministic Linear params (nn.Linear(nodedim+edgedim, nodedim) shapes).
    in_features = nodedim + edgedim
    bound = 1.0 / np.sqrt(in_features)
    weight = jax.random.uniform(k4, (nodedim, in_features), jnp.float32, -bound, bound)
    bias = jax.random.uniform(k5, (nodedim,), jnp.float32, -bound, bound)

    ref = node_block_reference(nodes, edges, receivers, weight, bias)

    # Exact path: f32 one-hot aggregation matmul (matches reference to 1e-5).
    out_f32 = node_block_forward(nodes, edges, receivers, weight, bias,
                                 tm=16, tk=128, agg_dtype=jnp.float32)
    jax.block_until_ready(out_f32)
    np.testing.assert_allclose(np.asarray(out_f32), np.asarray(ref), rtol=1e-5, atol=1e-5)

    # Fast path: bf16 mask + bf16 edge cast into the MXU, f32 accumulator
    # (accuracy/speed knob flagged in the review).
    out_bf16 = node_block_forward(nodes, edges, receivers, weight, bias,
                                  tm=16, tk=128, agg_dtype=jnp.bfloat16)
    jax.block_until_ready(out_bf16)
    np.testing.assert_allclose(np.asarray(out_bf16), np.asarray(ref), rtol=5e-2, atol=5e-2)

    print("KERNEL_OK")
</pallas_src>

<mosaic_0001>
module attributes {stable_mosaic.version = 11 : i64} {
  func.func @node_block_kernel(%arg0: i32, %arg1: i32, %arg2: memref<1x128xi32, #tpu.memory_space<vmem>>, %arg3: memref<16x128xf32, #tpu.memory_space<vmem>>, %arg4: memref<128x128xf32, #tpu.memory_space<vmem>>, %arg5: memref<128x128xf32, #tpu.memory_space<vmem>>, %arg6: memref<128x128xf32, #tpu.memory_space<vmem>>, %arg7: memref<1x128xf32, #tpu.memory_space<vmem>>, %arg8: memref<16x128xf32, #tpu.memory_space<vmem>>, %arg9: memref<16x128xf32, #tpu.memory_space<vmem>>) attributes {dimension_semantics = [#tpu.dimension_semantics<parallel>, #tpu.dimension_semantics<arbitrary>], iteration_bounds = array<i64: 3, 3>, scalar_prefetch = 0 : i64, scratch_operands = 1 : i64, tpu.core_type = #tpu.core_type<tc>, window_params = [{transform_indices = @transform_0, window_bounds = array<i64: 1, 128>}, {transform_indices = @transform_1, window_bounds = array<i64: 16, 128>}, {transform_indices = @transform_2, window_bounds = array<i64: 128, 128>}, {pipeline_mode = #tpu.pipeline_mode<synchronous>, transform_indices = @transform_3, window_bounds = array<i64: 128, 128>}, {pipeline_mode = #tpu.pipeline_mode<synchronous>, transform_indices = @transform_4, window_bounds = array<i64: 128, 128>}, {pipeline_mode = #tpu.pipeline_mode<synchronous>, transform_indices = @transform_5, window_bounds = array<i64: 1, 128>}, {transform_indices = @transform_6, window_bounds = array<i64: 16, 128>}]} {
    %c0_i32 = arith.constant 0 : i32
    %0 = arith.cmpi eq, %arg1, %c0_i32 : i32
    %1 = arith.extui %0 : i1 to i32
    %c0_i32_0 = arith.constant 0 : i32
    %2 = arith.cmpi ne, %1, %c0_i32_0 : i32
    scf.if %2 {
      %cst_9 = arith.constant 0.000000e+00 : f32
      %20 = vector.broadcast %cst_9 : f32 to vector<16x128xf32>
      %c0_10 = arith.constant 0 : index
      %c0_11 = arith.constant 0 : index
      %21 = vector.load %arg9[%c0_10, %c0_11] : memref<16x128xf32, #tpu.memory_space<vmem>>, vector<16x128xf32>
      tpu.vector_store %arg9[%c0_10, %c0_11], %20 {strides = array<i32>} : memref<16x128xf32, #tpu.memory_space<vmem>>, vector<16x128xf32>,
    } else {
    }
    %3 = tpu.iota {dimensions = array<i32: 0>} : vector<16x128xi32>
    %c16_i32 = arith.constant 16 : i32
    %4 = arith.muli %arg0, %c16_i32 : i32
    %5 = vector.broadcast %4 : i32 to vector<16x128xi32>
    %6 = arith.addi %3, %5 : vector<16x128xi32>
    %c0 = arith.constant 0 : index
    %c0_1 = arith.constant 0 : index
    %7 = vector.load %arg2[%c0, %c0_1] : memref<1x128xi32, #tpu.memory_space<vmem>>, vector<1x128xi32>
    %8 = vector.broadcast %7 : vector<1x128xi32> to vector<16x128xi32>
    %9 = arith.cmpi eq, %6, %8 : vector<16x128xi32>
    %10 = arith.extui %9 : vector<16x128xi1> to vector<16x128xi32>
    %11 = arith.sitofp %10 : vector<16x128xi32> to vector<16x128xf32>
    %c0_2 = arith.constant 0 : index
    %c0_3 = arith.constant 0 : index
    %12 = vector.load %arg9[%c0_2, %c0_3] : memref<16x128xf32, #tpu.memory_space<vmem>>, vector<16x128xf32>
    %c0_4 = arith.constant 0 : index
    %c0_5 = arith.constant 0 : index
    %13 = vector.load %arg4[%c0_4, %c0_5] : memref<128x128xf32, #tpu.memory_space<vmem>>, vector<128x128xf32>
    %cst = arith.constant dense<0.000000e+00> : vector<16x128xf32>
    %14 = tpu.matmul %11, %13, %cst {dimension_numbers = #tpu.dot_dimension_numbers<[1], [0], [0], [1], [0, 0, 1, 1], [], []>} : vector<16x128xf32>, vector<128x128xf32>, vector<16x128xf32> -> vector<16x128xf32>
    %15 = arith.addf %12, %14 : vector<16x128xf32>
    %c0_6 = arith.constant 0 : index
    %c0_7 = arith.constant 0 : index
    %16 = vector.load %arg9[%c0_6, %c0_7] : memref<16x128xf32, #tpu.memory_space<vmem>>, vector<16x128xf32>
    tpu.vector_store %arg9[%c0_6, %c0_7], %15 {strides = array<i32>} : memref<16x128xf32, #tpu.memory_space<vmem>>, vector<16x128xf32>,
    %c2_i32 = arith.constant 2 : i32
    %17 = arith.cmpi eq, %arg1, %c2_i32 : i32
    %18 = arith.extui %17 : i1 to i32
    %c0_i32_8 = arith.constant 0 : i32
    %19 = arith.cmpi ne, %18, %c0_i32_8 : i32
    scf.if %19 {
      %c0_9 = arith.constant 0 : index
      %c0_10 = arith.constant 0 : index
      %20 = vector.load %arg3[%c0_9, %c0_10] : memref<16x128xf32, #tpu.memory_space<vmem>>, vector<16x128xf32>
      %c0_11 = arith.constant 0 : index
      %c0_12 = arith.constant 0 : index
      %21 = vector.load %arg5[%c0_11, %c0_12] : memref<128x128xf32, #tpu.memory_space<vmem>>, vector<128x128xf32>
      %cst_13 = arith.constant dense<0.000000e+00> : vector<16x128xf32>
      %22 = tpu.matmul %20, %21, %cst_13 {dimension_numbers = #tpu.dot_dimension_numbers<[1], [0], [0], [1], [0, 0, 1, 1], [], []>} : vector<16x128xf32>, vector<128x128xf32>, vector<16x128xf32> -> vector<16x128xf32>
      %c0_14 = arith.constant 0 : index
      %c0_15 = arith.constant 0 : index
      %23 = vector.load %arg9[%c0_14, %c0_15] : memref<16x128xf32, #tpu.memory_space<vmem>>, vector<16x128xf32>
      %c0_16 = arith.constant 0 : index
      %c0_17 = arith.constant 0 : index
      %24 = vector.load %arg6[%c0_16, %c0_17] : memref<128x128xf32, #tpu.memory_space<vmem>>, vector<128x128xf32>
      %cst_18 = arith.constant dense<0.000000e+00> : vector<16x128xf32>
      %25 = tpu.matmul %23, %24, %cst_18 {dimension_numbers = #tpu.dot_dimension_numbers<[1], [0], [0], [1], [0, 0, 1, 1], [], []>} : vector<16x128xf32>, vector<128x128xf32>, vector<16x128xf32> -> vector<16x128xf32>
      %26 = arith.addf %22, %25 : vector<16x128xf32>
      %c0_19 = arith.constant 0 : index
      %c0_20 = arith.constant 0 : index
      %27 = vector.load %arg7[%c0_19, %c0_20] : memref<1x128xf32, #tpu.memory_space<vmem>>, vector<1x128xf32>
      %28 = vector.broadcast %27 : vector<1x128xf32> to vector<16x128xf32>
      %29 = arith.addf %26, %28 : vector<16x128xf32>
      %c0_21 = arith.constant 0 : index
      %c0_22 = arith.constant 0 : index
      %30 = vector.load %arg8[%c0_21, %c0_22] : memref<16x128xf32, #tpu.memory_space<vmem>>, vector<16x128xf32>
      tpu.vector_store %arg8[%c0_21, %c0_22], %29 {strides = array<i32>} : memref<16x128xf32, #tpu.memory_space<vmem>>, vector<16x128xf32>,
    } else {
    }
    return
  }
  func.func @transform_0(%arg0: i32, %arg1: i32) -> (i32, i32) {
    %c0_i32 = arith.constant 0 : i32
    %c0_i32_0 = arith.constant 0 : i32
    return %c0_i32, %arg1 : i32, i32
  }
  func.func @transform_1(%arg0: i32, %arg1: i32) -> (i32, i32) {
    %c0_i32 = arith.constant 0 : i32
    %c0_i32_0 = arith.constant 0 : i32
    return %arg0, %c0_i32 : i32, i32
  }
  func.func @transform_2(%arg0: i32, %arg1: i32) -> (i32, i32) {
    %c0_i32 = arith.constant 0 : i32
    %c0_i32_0 = arith.constant 0 : i32
    return %arg1, %c0_i32 : i32, i32
  }
  func.func @transform_3(%arg0: i32, %arg1: i32) -> (i32, i32) {
    %c0_i32 = arith.constant 0 : i32
    %c0_i32_0 = arith.constant 0 : i32
    %c0_i32_1 = arith.constant 0 : i32
    return %c0_i32, %c0_i32_0 : i32, i32
  }
  func.func @transform_4(%arg0: i32, %arg1: i32) -> (i32, i32) {
    %c0_i32 = arith.constant 0 : i32
    %c0_i32_0 = arith.constant 0 : i32
    %c0_i32_1 = arith.constant 0 : i32
    return %c0_i32, %c0_i32_0 : i32, i32
  }
  func.func @transform_5(%arg0: i32, %arg1: i32) -> (i32, i32) {
    %c0_i32 = arith.constant 0 : i32
    %c0_i32_0 = arith.constant 0 : i32
    %c0_i32_1 = arith.constant 0 : i32
    return %c0_i32, %c0_i32_0 : i32, i32
  }
  func.func @transform_6(%arg0: i32, %arg1: i32) -> (i32, i32) {
    %c0_i32 = arith.constant 0 : i32
    %c0_i32_0 = arith.constant 0 : i32
    return %arg0, %c0_i32 : i32, i32
  }
}

</mosaic_0001>

<llo_original>
// kernel: tpu_custom_call.1
$region0: #{tpu_custom_call.1}
  #allocation0 [shape = 'u32[]', space=smem, size = 0x4, offset = 0x4, fixed_abs, tag = 'smem constant byte address 0x4 - core index']
  #allocation1 [shape = 'u32[144,128]{1,0:T(1,128)}', space=vmem, size = 0x12000, scoped, tag = 'internal scratch']
  #allocation2 [shape = 'f32[16,128]{1,0:T(8,128)}', space=vmem, size = 0x2000, scoped, tag = 'scratch operand']
  %s0 = inlined_call_operand.hbm [shape: s32[1,384], index: 0, kind: input, shape index: {}]
  %s1 = inlined_call_operand.hbm [shape: f32[48,128], index: 1, kind: input, shape index: {}]
  %s2 = inlined_call_operand.hbm [shape: f32[384,128], index: 2, kind: input, shape index: {}]
  %s3 = inlined_call_operand.hbm [shape: f32[128,128], index: 3, kind: input, shape index: {}]
  %s4 = inlined_call_operand.hbm [shape: f32[128,128], index: 4, kind: input, shape index: {}]
  %s5 = inlined_call_operand.vmem [shape: f32[1,128], index: 5, kind: input, shape index: {}]
  %s6 = inlined_call_operand.hbm [shape: f32[48,128], index: 6, kind: output, shape index: {}]
  %s7 = sld [smem:[#allocation0]]
  $region85: #{tpu_custom_call.1} parent=0
    _
  %s9 = ssub.s32 1, %s7
  %s10 = scalar_select 0, %s9, %s7
  $region1: #{tpu_custom_call.1} parent=0
    #allocation3 [shape = 'u8[1024]{0}', space=vmem, size = 0x400, scoped, tag = 'input window, operand 0']
    #allocation4 [shape = 's32[2]{0}', space=sflag, size = 0x8, scoped, tag = 'scoped memory for tpu_custom_call.1']
    #allocation5 [shape = 's32[2]{0}', space=sflag, size = 0x8, scoped, tag = 'scoped memory for tpu_custom_call.1']
    #allocation6 [shape = 'u8[16384]{0}', space=vmem, size = 0x4000, scoped, tag = 'input window, operand 1']
    #allocation7 [shape = 's32[2]{0}', space=sflag, size = 0x8, scoped, tag = 'scoped memory for tpu_custom_call.1']
    #allocation8 [shape = 'u8[131072]{0}', space=vmem, size = 0x20000, scoped, tag = 'input window, operand 2']
    #allocation9 [shape = 'u8[65536]{0}', space=vmem, size = 0x10000, scoped, tag = 'input window, operand 3, single buffered']
    #allocation10 [shape = 's32[1]{0}', space=sflag, size = 0x4, scoped, tag = 'scoped memory for tpu_custom_call.1']
    #allocation11 [shape = 'u8[65536]{0}', space=vmem, size = 0x10000, scoped, tag = 'input window, operand 4, single buffered']
    #allocation12 [shape = 'u8[16384]{0}', space=vmem, size = 0x4000, scoped, tag = 'output window, operand 0']
    %11 = vsyncpa [#allocation4], 0
    %s12 = scalar_lea.sflag [#allocation4], 1
    %13 = vsyncpa %s12, 0
    %14 = vsyncpa [#allocation7], 0
    %s15 = scalar_lea.sflag [#allocation7], 1
    %16 = vsyncpa %s15, 0
    %17 = vsyncpa [#allocation10], 0
    %18 = vsyncpa [#allocation5], 0
    %s19 = scalar_lea.sflag [#allocation5], 1
    %20 = vsyncpa %s19, 0
    loop: start=0, step=1, limit=11
    $region2: #{tpu_custom_call.1} parent=1 // loop_pre_header
      _
    $region3: #{tpu_custom_call.1} parent=1 // loop_header
      %s22 = sphi 0, %s26
      %p23 = scmp.ge.s32.totalorder %s22, 11
      %s29 = sphi 0, %s41
      %s30 = sphi 0, %s37
      %s31 = sphi 0, %s29
      %s32 = sphi 0, %s30
      %s33 = sphi 0, %s31
      %s34 = sphi 0, %s32
      %s44 = sphi 0, %s46
      %s47 = sphi 0, %s44
      %s48 = sphi 0, %s47
      %s64 = sphi 0, %s48
      %s70 = sphi 0, %s72
      %s73 = sphi 0, %s70
      %s74 = sphi 0, %s73
      %s90 = sphi 0, %s74
      %s96 = sphi 0, %s98
      %s99 = sphi 0, %s96
      %s100 = sphi 0, %s99
      %s116 = sphi 0, %s100
      %s120 = sphi 0, %s120
      %s122 = sphi 0, %s120
      %s123 = sphi 0, %s122
      %s137 = sphi 0, %s123
      %s141 = sphi 0, %s141
      %s143 = sphi 0, %s141
      %s144 = sphi 0, %s143
      %s158 = sphi 0, %s144
      %s162 = sphi 0, %s162
      %s164 = sphi 0, %s162
      %s165 = sphi 0, %s164
      %s179 = sphi 0, %s165
      %s185 = sphi 0, %s187
      %s188 = sphi 0, %s185
      %s189 = sphi 0, %s188
      %s205 = sphi 0, %s189
    $region4: #{tpu_custom_call.1} parent=1 // loop_header_branch
      %25 = sbr.rel (%p23) target = $region8
    $region5: #{tpu_custom_call.1} parent=1 // loop_body
      %s27 = ssub.s32 %s22, 1
      %s28 = ssub.s32 %s22, 2
      %s35 = sadd.s32 1, %s30
      %p36 = scmp.ge.s32.totalorder %s35, 3
      %s37 = scalar_select %p36, 0, %s35
      %s38 = sadd.s32 1, %s29
      %s39 = scalar_select %p36, %s38, %s29
      %p40 = scmp.ge.s32.totalorder %s39, 3
      %s41 = scalar_select %p40, 0, %s39
      %s42 = ssub.s32 %s30, %s37
      %p43 = scmp.eq.s32.totalorder %s42, 0
      %s45 = sadd.s32 %s44, 1
      %s46 = scalar_select %p43, %s44, %s45
      %p49 = pneg %p43
      %p50 = scmp.eq.s32.totalorder %s22, 8
      %p51 = por %p49, %p50
      %p52 = scmp.ne.s32.totalorder %s44, %s47
      %p53 = scmp.eq.s32.totalorder %s22, 0
      %p54 = por %p52, %p53
      %p55 = scmp.ne.s32.totalorder %s44, %s47
      %p56 = scmp.eq.s32.totalorder %s27, 8
      %p57 = por %p55, %p56
      %p58 = scmp.ne.s32.totalorder %s47, %s48
      %p59 = scmp.eq.s32.totalorder %s27, 0
      %p60 = por %p58, %p59
      %p61 = scmp.ne.s32.totalorder %s47, %s48
      %p62 = scmp.eq.s32.totalorder %s28, 8
      %p63 = por %p61, %p62
      %p65 = scmp.ne.s32.totalorder %s48, %s64
      %p66 = scmp.eq.s32.totalorder %s28, 0
      %p67 = por %p65, %p66
      %s68 = ssub.s32 %s29, %s41
      %p69 = scmp.eq.s32.totalorder %s68, 0
      %s71 = sadd.s32 %s70, 1
      %s72 = scalar_select %p69, %s70, %s71
      %p75 = pneg %p69
      %p76 = scmp.eq.s32.totalorder %s22, 8
      %p77 = por %p75, %p76
      %p78 = scmp.ne.s32.totalorder %s70, %s73
      %p79 = scmp.eq.s32.totalorder %s22, 0
      %p80 = por %p78, %p79
      %p81 = scmp.ne.s32.totalorder %s70, %s73
      %p82 = scmp.eq.s32.totalorder %s27, 8
      %p83 = por %p81, %p82
      %p84 = scmp.ne.s32.totalorder %s73, %s74
      %p85 = scmp.eq.s32.totalorder %s27, 0
      %p86 = por %p84, %p85
      %p87 = scmp.ne.s32.totalorder %s73, %s74
      %p88 = scmp.eq.s32.totalorder %s28, 8
      %p89 = por %p87, %p88
      %p91 = scmp.ne.s32.totalorder %s74, %s90
      %p92 = scmp.eq.s32.totalorder %s28, 0
      %p93 = por %p91, %p92
      %s94 = ssub.s32 %s30, %s37
      %p95 = scmp.eq.s32.totalorder %s94, 0
      %s97 = sadd.s32 %s96, 1
      %s98 = scalar_select %p95, %s96, %s97
      %p101 = pneg %p95
      %p102 = scmp.eq.s32.totalorder %s22, 8
      %p103 = por %p101, %p102
      %p104 = scmp.ne.s32.totalorder %s96, %s99
      %p105 = scmp.eq.s32.totalorder %s22, 0
      %p106 = por %p104, %p105
      %p107 = scmp.ne.s32.totalorder %s96, %s99
      %p108 = scmp.eq.s32.totalorder %s27, 8
      %p109 = por %p107, %p108
      %p110 = scmp.ne.s32.totalorder %s99, %s100
      %p111 = scmp.eq.s32.totalorder %s27, 0
      %p112 = por %p110, %p111
      %p113 = scmp.ne.s32.totalorder %s99, %s100
      %p114 = scmp.eq.s32.totalorder %s28, 8
      %p115 = por %p113, %p114
      %p117 = scmp.ne.s32.totalorder %s100, %s116
      %p118 = scmp.eq.s32.totalorder %s28, 0
      %p119 = por %p117, %p118
      %s121 = sadd.s32 %s120, 1
      %p124 = scmp.eq.s32.totalorder %s22, 8
      %p125 = scmp.ne.s32.totalorder %s120, %s122
      %p126 = scmp.eq.s32.totalorder %s22, 0
      %p127 = por %p125, %p126
      %p128 = scmp.ne.s32.totalorder %s120, %s122
      %p129 = scmp.eq.s32.totalorder %s27, 8
      %p130 = por %p128, %p129
      %p131 = scmp.ne.s32.totalorder %s122, %s123
      %p132 = scmp.eq.s32.totalorder %s27, 0
      %p133 = por %p131, %p132
      %p134 = scmp.ne.s32.totalorder %s122, %s123
      %p135 = scmp.eq.s32.totalorder %s28, 8
      %p136 = por %p134, %p135
      %p138 = scmp.ne.s32.totalorder %s123, %s137
      %p139 = scmp.eq.s32.totalorder %s28, 0
      %p140 = por %p138, %p139
      %s142 = sadd.s32 %s141, 1
      %p145 = scmp.eq.s32.totalorder %s22, 8
      %p146 = scmp.ne.s32.totalorder %s141, %s143
      %p147 = scmp.eq.s32.totalorder %s22, 0
      %p148 = por %p146, %p147
      %p149 = scmp.ne.s32.totalorder %s141, %s143
      %p150 = scmp.eq.s32.totalorder %s27, 8
      %p151 = por %p149, %p150
      %p152 = scmp.ne.s32.totalorder %s143, %s144
      %p153 = scmp.eq.s32.totalorder %s27, 0
      %p154 = por %p152, %p153
      %p155 = scmp.ne.s32.totalorder %s143, %s144
      %p156 = scmp.eq.s32.totalorder %s28, 8
      %p157 = por %p155, %p156
      %p159 = scmp.ne.s32.totalorder %s144, %s158
      %p160 = scmp.eq.s32.totalorder %s28, 0
      %p161 = por %p159, %p160
      %s163 = sadd.s32 %s162, 1
      %p166 = scmp.eq.s32.totalorder %s22, 8
      %p167 = scmp.ne.s32.totalorder %s162, %s164
      %p168 = scmp.eq.s32.totalorder %s22, 0
      %p169 = por %p167, %p168
      %p170 = scmp.ne.s32.totalorder %s162, %s164
      %p171 = scmp.eq.s32.totalorder %s27, 8
      %p172 = por %p170, %p171
      %p173 = scmp.ne.s32.totalorder %s164, %s165
      %p174 = scmp.eq.s32.totalorder %s27, 0
      %p175 = por %p173, %p174
      %p176 = scmp.ne.s32.totalorder %s164, %s165
      %p177 = scmp.eq.s32.totalorder %s28, 8
      %p178 = por %p176, %p177
      %p180 = scmp.ne.s32.totalorder %s165, %s179
      %p181 = scmp.eq.s32.totalorder %s28, 0
      %p182 = por %p180, %p181
      %s183 = ssub.s32 %s29, %s41
      %p184 = scmp.eq.s32.totalorder %s183, 0
      %s186 = sadd.s32 %s185, 1
      %s187 = scalar_select %p184, %s185, %s186
      %p190 = pneg %p184
      %p191 = scmp.eq.s32.totalorder %s22, 8
      %p192 = por %p190, %p191
      %p193 = scmp.ne.s32.totalorder %s185, %s188
      %p194 = scmp.eq.s32.totalorder %s22, 0
      %p195 = por %p193, %p194
      %p196 = scmp.ne.s32.totalorder %s185, %s188
      %p197 = scmp.eq.s32.totalorder %s27, 8
      %p198 = por %p196, %p197
      %p199 = scmp.ne.s32.totalorder %s188, %s189
      %p200 = scmp.eq.s32.totalorder %s27, 0
      %p201 = por %p199, %p200
      %p202 = scmp.ne.s32.totalorder %s188, %s189
      %p203 = scmp.eq.s32.totalorder %s28, 8
      %p204 = por %p202, %p203
      %p206 = scmp.ne.s32.totalorder %s189, %s205
      %p207 = scmp.eq.s32.totalorder %s28, 0
      %p208 = por %p206, %p207
      %p209 = scmp.le.s32.totalorder 1, %s22
      %p210 = scmp.lt.s32.totalorder %s22, 10
      %p211 = pnand %p209, %p210
      %p212 = pneg %p211
      // Predicated region
      $region9: #{tpu_custom_call.1} parent=5 // pred_check
        _
      $region10: #{tpu_custom_call.1} parent=5 // pred_check_branch
        %214 = sbr.rel (%p211) target = $region12
      $region11: #{tpu_custom_call.1} parent=5 // pred_region
        %s215 = ssub.s32 %s22, 1
        // Predicated region
        $region13: #{tpu_custom_call.1} parent=11 // pred_check
          %p216 = pneg %p133
        $region14: #{tpu_custom_call.1} parent=11 // pred_check_branch
          %218 = sbr.rel (%p216) target = $region16
        $region15: #{tpu_custom_call.1} parent=11 // pred_region
          %s220 = ssub.s32 2048, 2048
          %221 = vsyncadd [#allocation10], %s220
          %s222 = sshll.u32 [#allocation9], 4
          %s223 = int_to_ptr.vmem [resolvable:$true] %s222
          %228 = dma.hbm_to_vmem [thread:$0]  %s3, 2048, %s223, [#allocation10], 128, 128, 8
        $region16: #{tpu_custom_call.1} parent=11 // pred_fallthru
          _
        // Predicated region
        $region17: #{tpu_custom_call.1} parent=11 // pred_check
          %p229 = pneg %p154
        $region18: #{tpu_custom_call.1} parent=11 // pred_check_branch
          %231 = sbr.rel (%p229) target = $region20
        $region19: #{tpu_custom_call.1} parent=11 // pred_region
          %s233 = ssub.s32 2048, 2048
          %234 = vsyncadd [#allocation10], %s233
          %s235 = sshll.u32 [#allocation11], 4
          %s236 = int_to_ptr.vmem [resolvable:$true] %s235
          %241 = dma.hbm_to_vmem [thread:$0]  %s4, 2048, %s236, [#allocation10], 128, 128, 8
        $region20: #{tpu_custom_call.1} parent=11 // pred_fallthru
          _
        // Predicated region
        $region21: #{tpu_custom_call.1} parent=11 // pred_check
          %p242 = pneg %p175
        $region22: #{tpu_custom_call.1} parent=11 // pred_check_branch
          %244 = sbr.rel (%p242) target = $region24
        $region23: #{tpu_custom_call.1} parent=11 // pred_region
          _
        $region24: #{tpu_custom_call.1} parent=11 // pred_fallthru
          _
      $region12: #{tpu_custom_call.1} parent=5 // pred_fallthru
        _
      %p245 = scmp.lt.s32.totalorder %s22, 9
      // Predicated region
      $region25: #{tpu_custom_call.1} parent=5 // pred_check
        %p246 = pneg %p245
      $region26: #{tpu_custom_call.1} parent=5 // pred_check_branch
        %248 = sbr.rel (%p246) target = $region28
      $region27: #{tpu_custom_call.1} parent=5 // pred_region
        // Predicated region
        $region29: #{tpu_custom_call.1} parent=27 // pred_check
          %p249 = pneg %p54
        $region30: #{tpu_custom_call.1} parent=27 // pred_check_branch
          %251 = sbr.rel (%p249) target = $region32
        $region31: #{tpu_custom_call.1} parent=27 // pred_region
          %s252 = sand.u32 %s44, 1
          %s253 = scalar_lea.sflag [#allocation4], %s252
          %s254 = sand.u32 %s44, 1
          %s255 = scalar_lea.vmem [#allocation3], %s254
          %s257 = ssub.s32 16, 16
          %258 = vsyncadd %s253, %s257
          %s259 = smul.addr %s30, 16
          %s260 = scalar_lea.hbm %s0, %s259
          %s262 = sshll.u32 %s255, 4
          %s263 = int_to_ptr.vmem [resolvable:$true] %s262
          %265 = dma.hbm_to_vmem [thread:$0]  %s260, 16, %s263, %s253
        $region32: #{tpu_custom_call.1} parent=27 // pred_fallthru
          _
        // Predicated region
        $region33: #{tpu_custom_call.1} parent=27 // pred_check
          %p266 = pneg %p80
        $region34: #{tpu_custom_call.1} parent=27 // pred_check_branch
          %268 = sbr.rel (%p266) target = $region36
        $region35: #{tpu_custom_call.1} parent=27 // pred_region
          %s269 = sand.u32 %s22, 1
          %s270 = scalar_lea.sflag [#allocation7], %s269
          %s271 = sand.u32 %s70, 1
          %s272 = smul.addr %s271, 16
          %s273 = scalar_lea.vmem [#allocation6], %s272
          %s274 = smul.u32 2, %s29
          %s276 = ssub.s32 256, 256
          %277 = vsyncadd %s270, %s276
          %s278 = smul.addr %s274, 128
          %s279 = scalar_lea.hbm %s1, %s278
          %s280 = sshll.u32 %s273, 4
          %s281 = int_to_ptr.vmem [resolvable:$true] %s280
          %286 = dma.hbm_to_vmem [thread:$0]  %s279, 256, %s281, %s270, 128, 128, 8
        $region36: #{tpu_custom_call.1} parent=27 // pred_fallthru
          _
        // Predicated region
        $region37: #{tpu_custom_call.1} parent=27 // pred_check
          %p287 = pneg %p106
        $region38: #{tpu_custom_call.1} parent=27 // pred_check_branch
          %289 = sbr.rel (%p287) target = $region40
        $region39: #{tpu_custom_call.1} parent=27 // pred_region
          %s290 = sand.u32 %s22, 1
          %s291 = scalar_lea.sflag [#allocation7], %s290
          %s292 = sand.u32 %s96, 1
          %s293 = smul.addr %s292, 128
          %s294 = scalar_lea.vmem [#allocation8], %s293
          %s295 = smul.u32 16, %s30
          %s297 = ssub.s32 2048, 2048
          %298 = vsyncadd %s291, %s297
          %s299 = smul.addr %s295, 128
          %s300 = scalar_lea.hbm %s2, %s299
          %s301 = sshll.u32 %s294, 4
          %s302 = int_to_ptr.vmem [resolvable:$true] %s301
          %307 = dma.hbm_to_vmem [thread:$0]  %s300, 2048, %s302, %s291, 128, 128, 8
        $region40: #{tpu_custom_call.1} parent=27 // pred_fallthru
          _
      $region28: #{tpu_custom_call.1} parent=5 // pred_fallthru
        _
      %p308 = scmp.le.s32.totalorder 1, %s22
      %p309 = scmp.lt.s32.totalorder %s22, 10
      %p310 = pnand %p308, %p309
      %p311 = pneg %p310
      // Predicated region
      $region41: #{tpu_custom_call.1} parent=5 // pred_check
        _
      $region42: #{tpu_custom_call.1} parent=5 // pred_check_branch
        %313 = sbr.rel (%p310) target = $region44
      $region43: #{tpu_custom_call.1} parent=5 // pred_region
        %s314 = ssub.s32 %s22, 1
        %s315 = sand.u32 %s47, 1
        %s316 = scalar_lea.sflag [#allocation4], %s315
        %s317 = sand.u32 %s47, 1
        %s318 = scalar_lea.vmem [#allocation3], %s317
        // Predicated region
        $region45: #{tpu_custom_call.1} parent=43 // pred_check
          %p319 = pneg %p60
        $region46: #{tpu_custom_call.1} parent=43 // pred_check_branch
          %321 = sbr.rel (%p319) target = $region48
        $region47: #{tpu_custom_call.1} parent=43 // pred_region
          %322 = dma.done %s316, 16
        $region48: #{tpu_custom_call.1} parent=43 // pred_fallthru
          _
        %s323 = sand.u32 %s27, 1
        %s324 = scalar_lea.sflag [#allocation7], %s323
        %s325 = sand.u32 %s73, 1
        %s326 = smul.addr %s325, 16
        %s327 = scalar_lea.vmem [#allocation6], %s326
        // Predicated region
        $region49: #{tpu_custom_call.1} parent=43 // pred_check
          %p328 = pneg %p86
        $region50: #{tpu_custom_call.1} parent=43 // pred_check_branch
          %330 = sbr.rel (%p328) target = $region52
        $region51: #{tpu_custom_call.1} parent=43 // pred_region
          %331 = dma.done %s324, 256
        $region52: #{tpu_custom_call.1} parent=43 // pred_fallthru
          _
        %s332 = sand.u32 %s27, 1
        %s333 = scalar_lea.sflag [#allocation7], %s332
        %s334 = sand.u32 %s99, 1
        %s335 = smul.addr %s334, 128
        %s336 = scalar_lea.vmem [#allocation8], %s335
        // Predicated region
        $region53: #{tpu_custom_call.1} parent=43 // pred_check
          %p337 = pneg %p112
        $region54: #{tpu_custom_call.1} parent=43 // pred_check_branch
          %339 = sbr.rel (%p337) target = $region56
        $region55: #{tpu_custom_call.1} parent=43 // pred_region
          %340 = dma.done %s333, 2048
        $region56: #{tpu_custom_call.1} parent=43 // pred_fallthru
          _
        // Predicated region
        $region57: #{tpu_custom_call.1} parent=43 // pred_check
          %p341 = pneg %p133
        $region58: #{tpu_custom_call.1} parent=43 // pred_check_branch
          %343 = sbr.rel (%p341) target = $region60
        $region59: #{tpu_custom_call.1} parent=43 // pred_region
          %344 = dma.done [#allocation10], 2048
        $region60: #{tpu_custom_call.1} parent=43 // pred_fallthru
          _
        // Predicated region
        $region61: #{tpu_custom_call.1} parent=43 // pred_check
          %p345 = pneg %p154
        $region62: #{tpu_custom_call.1} parent=43 // pred_check_branch
          %347 = sbr.rel (%p345) target = $region64
        $region63: #{tpu_custom_call.1} parent=43 // pred_region
          %348 = dma.done [#allocation10], 2048
        $region64: #{tpu_custom_call.1} parent=43 // pred_fallthru
          _
        %s349 = sand.u32 %s47, 1
        %s350 = scalar_lea.sflag [#allocation4], %s349
        %s351 = sand.u32 %s47, 1
        %s352 = scalar_lea.vmem [#allocation3], %s351
        %p353 = pneg %p60
        %p354 = pneg %p57
        %s355 = sand.u32 %s27, 1
        %s356 = scalar_lea.sflag [#allocation7], %s355
        %s357 = sand.u32 %s73, 1
        %s358 = smul.addr %s357, 16
        %s359 = scalar_lea.vmem [#allocation6], %s358
        %p360 = pneg %p86
        %p361 = pneg %p83
        %s362 = sand.u32 %s27, 1
        %s363 = scalar_lea.sflag [#allocation7], %s362
        %s364 = sand.u32 %s99, 1
        %s365 = smul.addr %s364, 128
        %s366 = scalar_lea.vmem [#allocation8], %s365
        %p367 = pneg %p112
        %p368 = pneg %p109
        %p369 = pneg %p133
        %p370 = pneg %p130
        %p371 = pneg %p154
        %p372 = pneg %p151
        %p373 = pneg %p175
        %p374 = pneg %p172
        %p375 = pneg %p201
        %p376 = pneg %p198
        %s377 = sand.u32 %s188, 1
        %s378 = scalar_lea.sflag [#allocation5], %s377
        %s379 = sand.u32 %s188, 1
        %s380 = smul.addr %s379, 16
        %s381 = scalar_lea.vmem [#allocation12], %s380
        %s382 = smul.u32 2, %s31
        %s383 = smul.u32 16, %s32
        %s384 = smul.u32 2, %s31
        %p385 = scmp.eq.s32.totalorder %s32, 0
        // Predicated region
        $region65: #{tpu_custom_call.1} parent=43 // pred_check
          %p386 = pneg %p385
        $region66: #{tpu_custom_call.1} parent=43 // pred_check_branch
          %388 = sbr.rel (%p386) target = $region68
        $region67: #{tpu_custom_call.1} parent=43 // pred_region
          %389 = vst [vmem:[#allocation2] sm:$0xff] 0.0
          %390 = vst [vmem:[#allocation2 + $0x8] sm:$0xff] 0.0
        $region68: #{tpu_custom_call.1} parent=43 // pred_fallthru
          _
        %v391 = vlaneseq
        %v392 = vshrl.u32 %v391, 7
        %v393 = vadd.s32 %v392, 8
        %s394 = smul.u32 %s31, 16
        %v395 = vstv %s394
        %v396 = vadd.s32 %v392, %v395
        %v397 = vadd.s32 %v393, %v395
        %v398 = vld [vmem:[%s318] sm:$0x1]
        %v399 = vlaneseq
        %v400 = vshrl.u32 %v399, 7
        %v401 = vsub.s32 0, %v400
        %v402 = vrot.slane %v398, %v401
        %vm403 = vcmp.eq.s32.totalorder %v396, %v402
        %vm404 = vcmp.eq.s32.totalorder %v397, %v402
        %v405 = vsel %vm403, 1, 0
        %v406 = vsel %vm404, 1, 0
        %v407 = vcvt.s32.f32 %v405
        %v408 = vcvt.s32.f32 %v406
        %v409 = vld [vmem:[#allocation2] sm:$0xff]
        %v410 = vld [vmem:[#allocation2 + $0x8] sm:$0xff]
        %v411 = vld [vmem:[%s336] sm:$0xff]
        %v412 = vld [vmem:[%s336 + $0x8] sm:$0xff]
        %v413 = vld [vmem:[%s336 + $0x10] sm:$0xff]
        %v414 = vld [vmem:[%s336 + $0x18] sm:$0xff]
        %v415 = vld [vmem:[%s336 + $0x20] sm:$0xff]
        %v416 = vld [vmem:[%s336 + $0x28] sm:$0xff]
        %v417 = vld [vmem:[%s336 + $0x30] sm:$0xff]
        %v418 = vld [vmem:[%s336 + $0x38] sm:$0xff]
        %v419 = vld [vmem:[%s336 + $0x40] sm:$0xff]
        %v420 = vld [vmem:[%s336 + $0x48] sm:$0xff]
        %v421 = vld [vmem:[%s336 + $0x50] sm:$0xff]
        %v422 = vld [vmem:[%s336 + $0x58] sm:$0xff]
        %v423 = vld [vmem:[%s336 + $0x60] sm:$0xff]
        %v424 = vld [vmem:[%s336 + $0x68] sm:$0xff]
        %v425 = vld [vmem:[%s336 + $0x70] sm:$0xff]
        %v426 = vld [vmem:[%s336 + $0x78] sm:$0xff]
        %427 = vmatprep.subr.mxu0 0.0
        %428 = vmatpush1.msra.mxu0 %v426
        %429 = vmatprep.subr.mxu0 0.0
        %430 = vmatpush1.msra.mxu0 %v425
        %431 = vmatprep.subr.mxu0 0.0
        %432 = vmatpush1.msra.mxu0 %v424
        %433 = vmatprep.subr.mxu0 0.0
        %434 = vmatpush1.msra.mxu0 %v423
        %435 = vmatprep.subr.mxu0 0.0
        %436 = vmatpush1.msra.mxu0 %v422
        %437 = vmatprep.subr.mxu0 0.0
        %438 = vmatpush1.msra.mxu0 %v421
        %439 = vmatprep.subr.mxu0 0.0
        %440 = vmatpush1.msra.mxu0 %v420
        %441 = vmatprep.subr.mxu0 0.0
        %442 = vmatpush1.msra.mxu0 %v419
        %443 = vmatprep.subr.mxu0 0.0
        %444 = vmatpush1.msra.mxu0 %v418
        %445 = vmatprep.subr.mxu0 0.0
        %446 = vmatpush1.msra.mxu0 %v417
        %447 = vmatprep.subr.mxu0 0.0
        %448 = vmatpush1.msra.mxu0 %v416
        %449 = vmatprep.subr.mxu0 0.0
        %450 = vmatpush1.msra.mxu0 %v415
        %451 = vmatprep.subr.mxu0 0.0
        %452 = vmatpush1.msra.mxu0 %v414
        %453 = vmatprep.subr.mxu0 0.0
        %454 = vmatpush1.msra.mxu0 %v413
        %455 = vmatprep.subr.mxu0 0.0
        %456 = vmatpush1.msra.mxu0 %v412
        %457 = vmatprep.subr.mxu0 0.0
        %458 = vmatpush1.msra.mxu0 %v411
        %459 = vmatprep.subr.mxu0 0.0
        %460 = vmatpush2.msra.mxu0 0.0
        %461 = vmatprep.subr.mxu0 0.0
        %462 = vmatpush2.msra.mxu0 0.0
        %463 = vmatprep.subr.mxu0 0.0
        %464 = vmatpush2.msra.mxu0 0.0
        %465 = vmatprep.subr.mxu0 0.0
        %466 = vmatpush2.msra.mxu0 0.0
        %467 = vmatprep.subr.mxu0 0.0
        %468 = vmatpush2.msra.mxu0 0.0
        %469 = vmatprep.subr.mxu0 0.0
        %470 = vmatpush2.msra.mxu0 0.0
        %471 = vmatprep.subr.mxu0 0.0
        %472 = vmatpush2.msra.mxu0 0.0
        %473 = vmatprep.subr.mxu0 0.0
        %474 = vmatpush2.msra.mxu0 0.0
        %475 = vmatprep.subr.mxu0 0.0
        %476 = vmatpush2.msra.mxu0 0.0
        %477 = vmatprep.subr.mxu0 0.0
        %478 = vmatpush2.msra.mxu0 0.0
        %479 = vmatprep.subr.mxu0 0.0
        %480 = vmatpush2.msra.mxu0 0.0
        %481 = vmatprep.subr.mxu0 0.0
        %482 = vmatpush2.msra.mxu0 0.0
        %483 = vmatprep.subr.mxu0 0.0
        %484 = vmatpush2.msra.mxu0 0.0
        %485 = vmatprep.subr.mxu0 0.0
        %486 = vmatpush2.msra.mxu0 0.0
        %487 = vmatprep.subr.mxu0 0.0
        %488 = vmatpush2.msra.mxu0 0.0
        %489 = vmatprep.subr.mxu0 0.0
        %490 = vmatpush2.msra.mxu0 0.0
        %491 = vmatprep.mubr.f32.mxu0 0.0
        %492 = vmatmul.mubr.f32.gmra.mxu0 %v407
        %v493 = vpop.f32.mrf.mxu0
        %v494 = vadd.f32 0.0, %v493
        %v495 = vpop.f32.mrf.mxu0
        %496 = vmatprep.mubr.f32.mxu0 0.0
        %497 = vmatmul.mubr.f32.gmra.mxu0 %v408
        %v498 = vpop.f32.mrf.mxu0
        %v499 = vadd.f32 0.0, %v498
        %v500 = vpop.f32.mrf.mxu0
        %501 = vdwg.mxu0
        %v502 = vadd.f32 %v409, %v494
        %v503 = vadd.f32 %v410, %v499
        %504 = vst [vmem:[#allocation2] sm:$0xff] %v502
        %505 = vst [vmem:[#allocation2 + $0x8] sm:$0xff] %v503
        %p506 = scmp.eq.s32.totalorder %s32, 2
        // Predicated region
        $region69: #{tpu_custom_call.1} parent=43 // pred_check
          %p507 = pneg %p506
        $region70: #{tpu_custom_call.1} parent=43 // pred_check_branch
          %509 = sbr.rel (%p507) target = $region72
        $region71: #{tpu_custom_call.1} parent=43 // pred_region
          %v510 = vld [vmem:[%s327] sm:$0xff]
          %v511 = vld [vmem:[%s327 + $0x8] sm:$0xff]
          %v512 = vld [vmem:[#allocation9] sm:$0xff]
          %v513 = vld [vmem:[#allocation9 + $0x8] sm:$0xff]
          %v514 = vld [vmem:[#allocation9 + $0x10] sm:$0xff]
          %v515 = vld [vmem:[#allocation9 + $0x18] sm:$0xff]
          %v516 = vld [vmem:[#allocation9 + $0x20] sm:$0xff]
          %v517 = vld [vmem:[#allocation9 + $0x28] sm:$0xff]
          %v518 = vld [vmem:[#allocation9 + $0x30] sm:$0xff]
          %v519 = vld [vmem:[#allocation9 + $0x38] sm:$0xff]
          %v520 = vld [vmem:[#allocation9 + $0x40] sm:$0xff]
          %v521 = vld [vmem:[#allocation9 + $0x48] sm:$0xff]
          %v522 = vld [vmem:[#allocation9 + $0x50] sm:$0xff]
          %v523 = vld [vmem:[#allocation9 + $0x58] sm:$0xff]
          %v524 = vld [vmem:[#allocation9 + $0x60] sm:$0xff]
          %v525 = vld [vmem:[#allocation9 + $0x68] sm:$0xff]
          %v526 = vld [vmem:[#allocation9 + $0x70] sm:$0xff]
          %v527 = vld [vmem:[#allocation9 + $0x78] sm:$0xff]
          %v528 = vld [vmem:[#allocation2] sm:$0xff]
          %v529 = vld [vmem:[#allocation2 + $0x8] sm:$0xff]
          %v530 = vld [vmem:[#allocation11] sm:$0xff]
          %v531 = vld [vmem:[#allocation11 + $0x8] sm:$0xff]
          %v532 = vld [vmem:[#allocation11 + $0x10] sm:$0xff]
          %v533 = vld [vmem:[#allocation11 + $0x18] sm:$0xff]
          %v534 = vld [vmem:[#allocation11 + $0x20] sm:$0xff]
          %v535 = vld [vmem:[#allocation11 + $0x28] sm:$0xff]
          %v536 = vld [vmem:[#allocation11 + $0x30] sm:$0xff]
          %v537 = vld [vmem:[#allocation11 + $0x38] sm:$0xff]
          %v538 = vld [vmem:[#allocation11 + $0x40] sm:$0xff]
          %v539 = vld [vmem:[#allocation11 + $0x48] sm:$0xff]
          %v540 = vld [vmem:[#allocation11 + $0x50] sm:$0xff]
          %v541 = vld [vmem:[#allocation11 + $0x58] sm:$0xff]
          %v542 = vld [vmem:[#allocation11 + $0x60] sm:$0xff]
          %v543 = vld [vmem:[#allocation11 + $0x68] sm:$0xff]
          %v544 = vld [vmem:[#allocation11 + $0x70] sm:$0xff]
          %v545 = vld [vmem:[#allocation11 + $0x78] sm:$0xff]
          %546 = vmatprep.subr.mxu0 0.0
          %547 = vmatpush1.msra.mxu0 %v545
          %548 = vmatprep.subr.mxu0 0.0
          %549 = vmatpush1.msra.mxu0 %v544
          %550 = vmatprep.subr.mxu0 0.0
          %551 = vmatpush1.msra.mxu0 %v543
          %552 = vmatprep.subr.mxu0 0.0
          %553 = vmatpush1.msra.mxu0 %v542
          %554 = vmatprep.subr.mxu0 0.0
          %555 = vmatpush1.msra.mxu0 %v541
          %556 = vmatprep.subr.mxu0 0.0
          %557 = vmatpush1.msra.mxu0 %v540
          %558 = vmatprep.subr.mxu0 0.0
          %559 = vmatpush1.msra.mxu0 %v539
          %560 = vmatprep.subr.mxu0 0.0
          %561 = vmatpush1.msra.mxu0 %v538
          %562 = vmatprep.subr.mxu0 0.0
          %563 = vmatpush1.msra.mxu0 %v537
          %564 = vmatprep.subr.mxu0 0.0
          %565 = vmatpush1.msra.mxu0 %v536
          %566 = vmatprep.subr.mxu0 0.0
          %567 = vmatpush1.msra.mxu0 %v535
          %568 = vmatprep.subr.mxu0 0.0
          %569 = vmatpush1.msra.mxu0 %v534
          %570 = vmatprep.subr.mxu0 0.0
          %571 = vmatpush1.msra.mxu0 %v533
          %572 = vmatprep.subr.mxu0 0.0
          %573 = vmatpush1.msra.mxu0 %v532
          %574 = vmatprep.subr.mxu0 0.0
          %575 = vmatpush1.msra.mxu0 %v531
          %576 = vmatprep.subr.mxu0 0.0
          %577 = vmatpush1.msra.mxu0 %v530
          %578 = vmatprep.subr.mxu0 0.0
          %579 = vmatpush2.msra.mxu0 0.0
          %580 = vmatprep.subr.mxu0 0.0
          %581 = vmatpush2.msra.mxu0 0.0
          %582 = vmatprep.subr.mxu0 0.0
          %583 = vmatpush2.msra.mxu0 0.0
          %584 = vmatprep.subr.mxu0 0.0
          %585 = vmatpush2.msra.mxu0 0.0
          %586 = vmatprep.subr.mxu0 0.0
          %587 = vmatpush2.msra.mxu0 0.0
          %588 = vmatprep.subr.mxu0 0.0
          %589 = vmatpush2.msra.mxu0 0.0
          %590 = vmatprep.subr.mxu0 0.0
          %591 = vmatpush2.msra.mxu0 0.0
          %592 = vmatprep.subr.mxu0 0.0
          %593 = vmatpush2.msra.mxu0 0.0
          %594 = vmatprep.subr.mxu0 0.0
          %595 = vmatpush2.msra.mxu0 0.0
          %596 = vmatprep.subr.mxu0 0.0
          %597 = vmatpush2.msra.mxu0 0.0
          %598 = vmatprep.subr.mxu0 0.0
          %599 = vmatpush2.msra.mxu0 0.0
          %600 = vmatprep.subr.mxu0 0.0
          %601 = vmatpush2.msra.mxu0 0.0
          %602 = vmatprep.subr.mxu0 0.0
          %603 = vmatpush2.msra.mxu0 0.0
          %604 = vmatprep.subr.mxu0 0.0
          %605 = vmatpush2.msra.mxu0 0.0
          %606 = vmatprep.subr.mxu0 0.0
          %607 = vmatpush2.msra.mxu0 0.0
          %608 = vmatprep.subr.mxu0 0.0
          %609 = vmatpush2.msra.mxu0 0.0
          %610 = vmatprep.mubr.f32.mxu0 0.0
          %611 = vmatmul.mubr.f32.gmra.mxu0 %v528
          %v612 = vpop.f32.mrf.mxu0
          %v613 = vadd.f32 0.0, %v612
          %v614 = vpop.f32.mrf.mxu0
          %615 = vmatprep.mubr.f32.mxu0 0.0
          %616 = vmatmul.mubr.f32.gmra.mxu0 %v529
          %v617 = vpop.f32.mrf.mxu0
          %v618 = vadd.f32 0.0, %v617
          %v619 = vpop.f32.mrf.mxu0
          %620 = vdwg.mxu0
          %621 = vmatprep.subr.mxu0 0.0
          %622 = vmatpush1.msra.mxu0 %v527
          %623 = vmatprep.subr.mxu0 0.0
          %624 = vmatpush1.msra.mxu0 %v526
          %625 = vmatprep.subr.mxu0 0.0
          %626 = vmatpush1.msra.mxu0 %v525
          %627 = vmatprep.subr.mxu0 0.0
          %628 = vmatpush1.msra.mxu0 %v524
          %629 = vmatprep.subr.mxu0 0.0
          %630 = vmatpush1.msra.mxu0 %v523
          %631 = vmatprep.subr.mxu0 0.0
          %632 = vmatpush1.msra.mxu0 %v522
          %633 = vmatprep.subr.mxu0 0.0
          %634 = vmatpush1.msra.mxu0 %v521
          %635 = vmatprep.subr.mxu0 0.0
          %636 = vmatpush1.msra.mxu0 %v520
          %637 = vmatprep.subr.mxu0 0.0
          %638 = vmatpush1.msra.mxu0 %v519
          %639 = vmatprep.subr.mxu0 0.0
          %640 = vmatpush1.msra.mxu0 %v518
          %641 = vmatprep.subr.mxu0 0.0
          %642 = vmatpush1.msra.mxu0 %v517
          %643 = vmatprep.subr.mxu0 0.0
          %644 = vmatpush1.msra.mxu0 %v516
          %645 = vmatprep.subr.mxu0 0.0
          %646 = vmatpush1.msra.mxu0 %v515
          %647 = vmatprep.subr.mxu0 0.0
          %648 = vmatpush1.msra.mxu0 %v514
          %649 = vmatprep.subr.mxu0 0.0
          %650 = vmatpush1.msra.mxu0 %v513
          %651 = vmatprep.subr.mxu0 0.0
          %652 = vmatpush1.msra.mxu0 %v512
          %653 = vmatprep.subr.mxu0 0.0
          %654 = vmatpush2.msra.mxu0 0.0
          %655 = vmatprep.subr.mxu0 0.0
          %656 = vmatpush2.msra.mxu0 0.0
          %657 = vmatprep.subr.mxu0 0.0
          %658 = vmatpush2.msra.mxu0 0.0
          %659 = vmatprep.subr.mxu0 0.0
          %660 = vmatpush2.msra.mxu0 0.0
          %661 = vmatprep.subr.mxu0 0.0
          %662 = vmatpush2.msra.mxu0 0.0
          %663 = vmatprep.subr.mxu0 0.0
          %664 = vmatpush2.msra.mxu0 0.0
          %665 = vmatprep.subr.mxu0 0.0
          %666 = vmatpush2.msra.mxu0 0.0
          %667 = vmatprep.subr.mxu0 0.0
          %668 = vmatpush2.msra.mxu0 0.0
          %669 = vmatprep.subr.mxu0 0.0
          %670 = vmatpush2.msra.mxu0 0.0
          %671 = vmatprep.subr.mxu0 0.0
          %672 = vmatpush2.msra.mxu0 0.0
          %673 = vmatprep.subr.mxu0 0.0
          %674 = vmatpush2.msra.mxu0 0.0
          %675 = vmatprep.subr.mxu0 0.0
          %676 = vmatpush2.msra.mxu0 0.0
          %677 = vmatprep.subr.mxu0 0.0
          %678 = vmatpush2.msra.mxu0 0.0
          %679 = vmatprep.subr.mxu0 0.0
          %680 = vmatpush2.msra.mxu0 0.0
          %681 = vmatprep.subr.mxu0 0.0
          %682 = vmatpush2.msra.mxu0 0.0
          %683 = vmatprep.subr.mxu0 0.0
          %684 = vmatpush2.msra.mxu0 0.0
          %685 = vmatprep.mubr.f32.mxu0 0.0
          %686 = vmatmul.mubr.f32.gmra.mxu0 %v510
          %v687 = vpop.f32.mrf.mxu0
          %v688 = vadd.f32 %v613, %v687
          %v689 = vpop.f32.mrf.mxu0
          %690 = vmatprep.mubr.f32.mxu0 0.0
          %691 = vmatmul.mubr.f32.gmra.mxu0 %v511
          %v692 = vpop.f32.mrf.mxu0
          %v693 = vadd.f32 %v618, %v692
          %v694 = vpop.f32.mrf.mxu0
          %695 = vdwg.mxu0
          %v696 = vld [vmem:[%s5] sm:$0x1]
          %v698 = vlaneseq
          %v699 = vshrl.u32 %v698, 7
          %v700 = vsub.s32 0, %v699
          %v701 = vrot.slane %v696, %v700
          %v703 = vadd.f32 %v688, %v701
          %v704 = vadd.f32 %v693, %v701
          %705 = vst [vmem:[%s381] sm:$0xff] %v703
          %706 = vst [vmem:[%s381 + $0x8] sm:$0xff] %v704
        $region72: #{tpu_custom_call.1} parent=43 // pred_fallthru
          _
        %s707 = sand.u32 %s188, 1
        %s708 = scalar_lea.sflag [#allocation5], %s707
        %s709 = sand.u32 %s188, 1
        %s710 = smul.addr %s709, 16
        %s711 = scalar_lea.vmem [#allocation12], %s710
        // Predicated region
        $region73: #{tpu_custom_call.1} parent=43 // pred_check
          %p712 = pneg %p198
        $region74: #{tpu_custom_call.1} parent=43 // pred_check_branch
          %714 = sbr.rel (%p712) target = $region76
        $region75: #{tpu_custom_call.1} parent=43 // pred_region
          %s715 = smul.u32 2, %s31
          %s717 = ssub.s32 256, 256
          %718 = vsyncadd %s708, %s717
          %s719 = smul.addr %s715, 128
          %s720 = scalar_lea.hbm %s6, %s719
          %s721 = sshll.u32 %s711, 4
          %s722 = int_to_ptr.vmem [resolvable:$true] %s721
          %727 = dma.vmem_to_hbm [thread:$0]  %s722, 256, %s720, %s708, 128, 128, 8
        $region76: #{tpu_custom_call.1} parent=43 // pred_fallthru
          _
      $region44: #{tpu_custom_call.1} parent=5 // pred_fallthru
        _
      %p728 = scmp.le.s32.totalorder 2, %s22
      // Predicated region
      $region77: #{tpu_custom_call.1} parent=5 // pred_check
        %p729 = pneg %p728
      $region78: #{tpu_custom_call.1} parent=5 // pred_check_branch
        %731 = sbr.rel (%p729) target = $region80
      $region79: #{tpu_custom_call.1} parent=5 // pred_region
        %s732 = ssub.s32 %s22, 2
        // Predicated region
        $region81: #{tpu_custom_call.1} parent=79 // pred_check
          %p733 = pneg %p204
        $region82: #{tpu_custom_call.1} parent=79 // pred_check_branch
          %735 = sbr.rel (%p733) target = $region84
        $region83: #{tpu_custom_call.1} parent=79 // pred_region
          %s736 = sand.u32 %s189, 1
          %s737 = scalar_lea.sflag [#allocation5], %s736
          %s738 = sand.u32 %s189, 1
          %s739 = smul.addr %s738, 16
          %s740 = scalar_lea.vmem [#allocation12], %s739
          %741 = dma.done %s737, 256
        $region84: #{tpu_custom_call.1} parent=79 // pred_fallthru
          _
      $region80: #{tpu_custom_call.1} parent=5 // pred_fallthru
        _
    $region6: #{tpu_custom_call.1} parent=1 // loop_footer
      %s26 = sadd.s32 1, %s22
    $region7: #{tpu_custom_call.1} parent=1 // loop_footer_branch
      %21 = sbr.rel target = $region3
    $region8: #{tpu_custom_call.1} parent=1 // loop_exit
      _
    %742 = vsyncpa [#allocation4], 1
    %s743 = scalar_lea.sflag [#allocation4], 1
    %744 = vsyncpa %s743, 1
    %745 = vsyncpa [#allocation7], 1
    %s746 = scalar_lea.sflag [#allocation7], 1
    %747 = vsyncpa %s746, 1
    %748 = vsyncpa [#allocation10], 1
    %749 = vsyncpa [#allocation5], 1
    %s750 = scalar_lea.sflag [#allocation5], 1
    %751 = vsyncpa %s750, 1

</llo_original>
